<compile_context>
chip_gen: v5e
topology: v5e:2x2
jax: 0.10.0
libtpu: 0.0.40
codegen_flags: <defaults>
</compile_context>

<pallas_src>
import functools

import jax
import jax.numpy as jnp
from jax import lax
from jax.experimental import pallas as pl
from jax.experimental.pallas import tpu as pltpu
import numpy as np


def _rnn_kernel(ids_ref, emb_ref, w_ref, out_ref, *, S, H1, H2, O,
                off_wih, off_whh, off_b, off_wo, off_bo):
    """Single-invocation kernel.

    ids_ref : (S,)        int32, SMEM  — token ids
    emb_ref : (V, 1, H1)  f32,   VMEM  — embedding table (leading dim indexed)
    w_ref   : (R, W)      f32,   VMEM  — packed [W_ih^T | W_hh^T | b_ih+b_hh | W_out^T | b_out]
    out_ref : (S, O)      f32,   VMEM
    """
    # Static slices of the packed weight slab (all offsets are compile-time,
    # 8-row aligned).
    wih = w_ref[off_wih:off_wih + H1, :H2]    # (H1, H2) = W_ih^T
    whh = w_ref[off_whh:off_whh + H2, :H2]    # (H2, H2) = W_hh^T
    b = w_ref[off_b:off_b + 1, :H2]           # (1, H2)  = b_ih + b_hh
    wout = w_ref[off_wo:off_wo + H2, :O]      # (H2, O)  = W_out^T
    bout = w_ref[off_bo:off_bo + 1, :O]       # (1, O)

    # 1) Fused embedding gather: S unrolled dynamic reads on the untiled
    #    leading dim of emb_ref (index scalars come from SMEM).  Exact gather.
    x = jnp.concatenate([emb_ref[ids_ref[t]] for t in range(S)], axis=0)  # (S, H1)

    # 2) Batched input projection, hoisted off the serial chain (stays in vregs).
    xw = jnp.dot(x, wih, preferred_element_type=jnp.float32) + b          # (S, H2)

    # 3) Serial recurrence: only h @ W_hh^T + tanh remains per step.
    #    Fully unrolled; hidden rows stay in vregs (no VMEM scratch round trip).
    h = jnp.zeros((1, H2), jnp.float32)
    h_rows = []
    for t in range(S):
        h = jnp.tanh(xw[t:t + 1, :] +
                     jnp.dot(h, whh, preferred_element_type=jnp.float32))
        h_rows.append(h)
    hs = jnp.concatenate(h_rows, axis=0)                                   # (S, H2)

    # 4) Batched output projection + single slab store.
    out_ref[...] = (jnp.dot(hs, wout, preferred_element_type=jnp.float32)
                    + bout).astype(out_ref.dtype)


def make_myrnn4_forward(emb_w, w_ih, w_hh, b_ih, b_hh, w_out, b_out):
    """One-time parameter prep (PyTorch layout in -> packed f32 slab), returns a
    jitted forward(ids) with MyRNN4 semantics after reset(): h0 = 0, batch = 1,
    output shape (S, 1, O)."""
    V, H1 = emb_w.shape
    H2 = w_hh.shape[0]
    O = w_out.shape[0]
    W = max(H1, H2)

    def pad2(a, rows, cols):
        a = jnp.asarray(a, jnp.float32)
        return jnp.pad(a, ((0, rows - a.shape[0]), (0, cols - a.shape[1])))

    r8 = lambda n: ((n + 7) // 8) * 8
    rH1, rH2 = r8(H1), r8(H2)
    off_wih = 0
    off_whh = off_wih + rH1
    off_b = off_whh + rH2
    off_wo = off_b + 8
    off_bo = off_wo + rH2

    # Single packed weight slab (one prologue DMA instead of five).
    slab = jnp.concatenate([
        pad2(jnp.asarray(w_ih).T, rH1, W),                    # W_ih^T
        pad2(jnp.asarray(w_hh).T, rH2, W),                    # W_hh^T
        pad2(jnp.asarray(b_ih + b_hh).reshape(1, H2), 8, W),  # fused bias
        pad2(jnp.asarray(w_out).T, rH2, W),                   # W_out^T
        pad2(jnp.asarray(b_out).reshape(1, O), 8, W),         # output bias
    ], axis=0)

    # Embedding table with the vocab dim leading (untiled) so token rows can be
    # dynamically indexed inside the kernel.
    emb3 = jnp.asarray(emb_w, jnp.float32).reshape(V, 1, H1)

    kern = functools.partial(
        _rnn_kernel, H1=H1, H2=H2, O=O,
        off_wih=off_wih, off_whh=off_whh, off_b=off_b,
        off_wo=off_wo, off_bo=off_bo)

    @jax.jit
    def forward(ids):
        S, B = ids.shape
        assert B == 1, "MyRNN4.reset() implies batch = 1"
        out = pl.pallas_call(
            functools.partial(kern, S=S),
            out_shape=jax.ShapeDtypeStruct((S, O), jnp.float32),
            # No grid: whole working set (~16 KB) lives in VMEM for one
            # invocation on all TPU generations.
            in_specs=[
                pl.BlockSpec(memory_space=pltpu.MemorySpace.SMEM),  # ids
                pl.BlockSpec(memory_space=pltpu.MemorySpace.VMEM),  # emb table
                pl.BlockSpec(memory_space=pltpu.MemorySpace.VMEM),  # packed weights
            ],
            out_specs=pl.BlockSpec(memory_space=pltpu.MemorySpace.VMEM),
        )(ids.reshape(S).astype(jnp.int32), emb3, slab)
        return out.reshape(S, B, O)

    return forward


def ref_forward(ids, emb_w, w_ih, w_hh, b_ih, b_hh, w_out, b_out):
    """Pure-JAX reference matching PyTorch semantics (batch=1, h0=zeros)."""
    x = emb_w[ids[:, 0]]                                # (S, H1)

    def step(h, xt):
        h_new = jnp.tanh(xt @ w_ih.T + b_ih + h @ w_hh.T + b_hh)
        return h_new, h_new

    h0 = jnp.zeros((w_hh.shape[0],), jnp.float32)
    _, hs = lax.scan(step, h0, x)                       # (S, H2)
    out = hs @ w_out.T + b_out                          # (S, O)
    return out[:, None, :]                              # (S, 1, O)


if __name__ == "__main__":
    # Small, deterministic sizes consistent with the module's __init__.
    V, H1, H2, O = 16, 32, 32, 4     # input_size, hidden_size1, hidden_size2, output_size
    S, B = 8, 1                      # seq_len, batch (=1 per reset())

    key = jax.random.PRNGKey(0)
    k_ids, k_emb, k_wih, k_whh, k_bih, k_bhh, k_wo, k_bo = jax.random.split(key, 8)

    ids = jax.random.randint(k_ids, (S, B), 0, V, dtype=jnp.int32)
    emb_w = jax.random.normal(k_emb, (V, H1), jnp.float32) * 0.1
    w_ih = jax.random.normal(k_wih, (H2, H1), jnp.float32) * 0.1
    w_hh = jax.random.normal(k_whh, (H2, H2), jnp.float32) * 0.1
    b_ih = jax.random.normal(k_bih, (H2,), jnp.float32) * 0.1
    b_hh = jax.random.normal(k_bhh, (H2,), jnp.float32) * 0.1
    w_out = jax.random.normal(k_wo, (O, H2), jnp.float32) * 0.1
    b_out = jax.random.normal(k_bo, (O,), jnp.float32) * 0.1

    forward = make_myrnn4_forward(emb_w, w_ih, w_hh, b_ih, b_hh, w_out, b_out)
    out = jax.block_until_ready(forward(ids))

    ref = ref_forward(ids, emb_w, w_ih, w_hh, b_ih, b_hh, w_out, b_out)
    np.testing.assert_allclose(np.asarray(out), np.asarray(ref), rtol=1e-4, atol=1e-5)

    print("KERNEL_OK")
</pallas_src>

<mosaic_0001>
module attributes {stable_mosaic.version = 11 : i64} {
  func.func @_rnn_kernel(%arg0: memref<8xi32, #tpu.memory_space<smem>>, %arg1: memref<16x1x32xf32, #tpu.memory_space<vmem>>, %arg2: memref<112x32xf32, #tpu.memory_space<vmem>>, %arg3: memref<8x4xf32, #tpu.memory_space<vmem>>) attributes {dimension_semantics = [], scalar_prefetch = 0 : i64, scratch_operands = 0 : i64, tpu.core_type = #tpu.core_type<tc>} {
    %c0 = arith.constant 0 : index
    %c0_0 = arith.constant 0 : index
    %0 = vector.load %arg2[%c0, %c0_0] : memref<112x32xf32, #tpu.memory_space<vmem>>, vector<32x32xf32>
    %c32 = arith.constant 32 : index
    %c0_1 = arith.constant 0 : index
    %1 = vector.load %arg2[%c32, %c0_1] : memref<112x32xf32, #tpu.memory_space<vmem>>, vector<32x32xf32>
    %c64 = arith.constant 64 : index
    %c0_2 = arith.constant 0 : index
    %2 = vector.load %arg2[%c64, %c0_2] : memref<112x32xf32, #tpu.memory_space<vmem>>, vector<1x32xf32>
    %c72 = arith.constant 72 : index
    %c0_3 = arith.constant 0 : index
    %3 = vector.load %arg2[%c72, %c0_3] : memref<112x32xf32, #tpu.memory_space<vmem>>, vector<32x4xf32>
    %c104 = arith.constant 104 : index
    %c0_4 = arith.constant 0 : index
    %4 = vector.load %arg2[%c104, %c0_4] : memref<112x32xf32, #tpu.memory_space<vmem>>, vector<1x4xf32>
    %c0_5 = arith.constant 0 : index
    %5 = memref.load %arg0[%c0_5] : memref<8xi32, #tpu.memory_space<smem>>
    %6 = arith.index_cast %5 : i32 to index
    %c0_6 = arith.constant 0 : index
    %c0_7 = arith.constant 0 : index
    %7 = vector.load %arg1[%6, %c0_6, %c0_7] : memref<16x1x32xf32, #tpu.memory_space<vmem>>, vector<1x1x32xf32>
    %8 = vector.shape_cast %7 : vector<1x1x32xf32> to vector<1x32xf32>
    %c1 = arith.constant 1 : index
    %9 = memref.load %arg0[%c1] : memref<8xi32, #tpu.memory_space<smem>>
    %10 = arith.index_cast %9 : i32 to index
    %c0_8 = arith.constant 0 : index
    %c0_9 = arith.constant 0 : index
    %11 = vector.load %arg1[%10, %c0_8, %c0_9] : memref<16x1x32xf32, #tpu.memory_space<vmem>>, vector<1x1x32xf32>
    %12 = vector.shape_cast %11 : vector<1x1x32xf32> to vector<1x32xf32>
    %c2 = arith.constant 2 : index
    %13 = memref.load %arg0[%c2] : memref<8xi32, #tpu.memory_space<smem>>
    %14 = arith.index_cast %13 : i32 to index
    %c0_10 = arith.constant 0 : index
    %c0_11 = arith.constant 0 : index
    %15 = vector.load %arg1[%14, %c0_10, %c0_11] : memref<16x1x32xf32, #tpu.memory_space<vmem>>, vector<1x1x32xf32>
    %16 = vector.shape_cast %15 : vector<1x1x32xf32> to vector<1x32xf32>
    %c3 = arith.constant 3 : index
    %17 = memref.load %arg0[%c3] : memref<8xi32, #tpu.memory_space<smem>>
    %18 = arith.index_cast %17 : i32 to index
    %c0_12 = arith.constant 0 : index
    %c0_13 = arith.constant 0 : index
    %19 = vector.load %arg1[%18, %c0_12, %c0_13] : memref<16x1x32xf32, #tpu.memory_space<vmem>>, vector<1x1x32xf32>
    %20 = vector.shape_cast %19 : vector<1x1x32xf32> to vector<1x32xf32>
    %c4 = arith.constant 4 : index
    %21 = memref.load %arg0[%c4] : memref<8xi32, #tpu.memory_space<smem>>
    %22 = arith.index_cast %21 : i32 to index
    %c0_14 = arith.constant 0 : index
    %c0_15 = arith.constant 0 : index
    %23 = vector.load %arg1[%22, %c0_14, %c0_15] : memref<16x1x32xf32, #tpu.memory_space<vmem>>, vector<1x1x32xf32>
    %24 = vector.shape_cast %23 : vector<1x1x32xf32> to vector<1x32xf32>
    %c5 = arith.constant 5 : index
    %25 = memref.load %arg0[%c5] : memref<8xi32, #tpu.memory_space<smem>>
    %26 = arith.index_cast %25 : i32 to index
    %c0_16 = arith.constant 0 : index
    %c0_17 = arith.constant 0 : index
    %27 = vector.load %arg1[%26, %c0_16, %c0_17] : memref<16x1x32xf32, #tpu.memory_space<vmem>>, vector<1x1x32xf32>
    %28 = vector.shape_cast %27 : vector<1x1x32xf32> to vector<1x32xf32>
    %c6 = arith.constant 6 : index
    %29 = memref.load %arg0[%c6] : memref<8xi32, #tpu.memory_space<smem>>
    %30 = arith.index_cast %29 : i32 to index
    %c0_18 = arith.constant 0 : index
    %c0_19 = arith.constant 0 : index
    %31 = vector.load %arg1[%30, %c0_18, %c0_19] : memref<16x1x32xf32, #tpu.memory_space<vmem>>, vector<1x1x32xf32>
    %32 = vector.shape_cast %31 : vector<1x1x32xf32> to vector<1x32xf32>
    %c7 = arith.constant 7 : index
    %33 = memref.load %arg0[%c7] : memref<8xi32, #tpu.memory_space<smem>>
    %34 = arith.index_cast %33 : i32 to index
    %c0_20 = arith.constant 0 : index
    %c0_21 = arith.constant 0 : index
    %35 = vector.load %arg1[%34, %c0_20, %c0_21] : memref<16x1x32xf32, #tpu.memory_space<vmem>>, vector<1x1x32xf32>
    %36 = vector.shape_cast %35 : vector<1x1x32xf32> to vector<1x32xf32>
    %37 = tpu.concatenate %8, %12, %16, %20, %24, %28, %32, %36 in 0 : vector<1x32xf32>, vector<1x32xf32>, vector<1x32xf32>, vector<1x32xf32>, vector<1x32xf32>, vector<1x32xf32>, vector<1x32xf32>, vector<1x32xf32> -> vector<8x32xf32>
    %cst = arith.constant dense<0.000000e+00> : vector<8x32xf32>
    %38 = tpu.matmul %37, %0, %cst {dimension_numbers = #tpu.dot_dimension_numbers<[1], [0], [0], [1], [0, 0, 1, 1], [], []>} : vector<8x32xf32>, vector<32x32xf32>, vector<8x32xf32> -> vector<8x32xf32>
    %39 = vector.broadcast %2 : vector<1x32xf32> to vector<8x32xf32>
    %40 = arith.addf %38, %39 : vector<8x32xf32>
    %cst_22 = arith.constant 0.000000e+00 : f32
    %41 = vector.broadcast %cst_22 : f32 to vector<1x32xf32>
    %42 = vector.extract_strided_slice %40 {offsets = [0, 0], sizes = [1, 32], strides = [1, 1]} : vector<8x32xf32> to vector<1x32xf32>
    %cst_23 = arith.constant dense<0.000000e+00> : vector<1x32xf32>
    %43 = tpu.matmul %41, %1, %cst_23 {dimension_numbers = #tpu.dot_dimension_numbers<[1], [0], [0], [1], [0, 0, 1, 1], [], []>} : vector<1x32xf32>, vector<32x32xf32>, vector<1x32xf32> -> vector<1x32xf32>
    %44 = arith.addf %42, %43 : vector<1x32xf32>
    %45 = math.tanh %44 : vector<1x32xf32>
    %46 = vector.extract_strided_slice %40 {offsets = [1, 0], sizes = [1, 32], strides = [1, 1]} : vector<8x32xf32> to vector<1x32xf32>
    %cst_24 = arith.constant dense<0.000000e+00> : vector<1x32xf32>
    %47 = tpu.matmul %45, %1, %cst_24 {dimension_numbers = #tpu.dot_dimension_numbers<[1], [0], [0], [1], [0, 0, 1, 1], [], []>} : vector<1x32xf32>, vector<32x32xf32>, vector<1x32xf32> -> vector<1x32xf32>
    %48 = arith.addf %46, %47 : vector<1x32xf32>
    %49 = math.tanh %48 : vector<1x32xf32>
    %50 = vector.extract_strided_slice %40 {offsets = [2, 0], sizes = [1, 32], strides = [1, 1]} : vector<8x32xf32> to vector<1x32xf32>
    %cst_25 = arith.constant dense<0.000000e+00> : vector<1x32xf32>
    %51 = tpu.matmul %49, %1, %cst_25 {dimension_numbers = #tpu.dot_dimension_numbers<[1], [0], [0], [1], [0, 0, 1, 1], [], []>} : vector<1x32xf32>, vector<32x32xf32>, vector<1x32xf32> -> vector<1x32xf32>
    %52 = arith.addf %50, %51 : vector<1x32xf32>
    %53 = math.tanh %52 : vector<1x32xf32>
    %54 = vector.extract_strided_slice %40 {offsets = [3, 0], sizes = [1, 32], strides = [1, 1]} : vector<8x32xf32> to vector<1x32xf32>
    %cst_26 = arith.constant dense<0.000000e+00> : vector<1x32xf32>
    %55 = tpu.matmul %53, %1, %cst_26 {dimension_numbers = #tpu.dot_dimension_numbers<[1], [0], [0], [1], [0, 0, 1, 1], [], []>} : vector<1x32xf32>, vector<32x32xf32>, vector<1x32xf32> -> vector<1x32xf32>
    %56 = arith.addf %54, %55 : vector<1x32xf32>
    %57 = math.tanh %56 : vector<1x32xf32>
    %58 = vector.extract_strided_slice %40 {offsets = [4, 0], sizes = [1, 32], strides = [1, 1]} : vector<8x32xf32> to vector<1x32xf32>
    %cst_27 = arith.constant dense<0.000000e+00> : vector<1x32xf32>
    %59 = tpu.matmul %57, %1, %cst_27 {dimension_numbers = #tpu.dot_dimension_numbers<[1], [0], [0], [1], [0, 0, 1, 1], [], []>} : vector<1x32xf32>, vector<32x32xf32>, vector<1x32xf32> -> vector<1x32xf32>
    %60 = arith.addf %58, %59 : vector<1x32xf32>
    %61 = math.tanh %60 : vector<1x32xf32>
    %62 = vector.extract_strided_slice %40 {offsets = [5, 0], sizes = [1, 32], strides = [1, 1]} : vector<8x32xf32> to vector<1x32xf32>
    %cst_28 = arith.constant dense<0.000000e+00> : vector<1x32xf32>
    %63 = tpu.matmul %61, %1, %cst_28 {dimension_numbers = #tpu.dot_dimension_numbers<[1], [0], [0], [1], [0, 0, 1, 1], [], []>} : vector<1x32xf32>, vector<32x32xf32>, vector<1x32xf32> -> vector<1x32xf32>
    %64 = arith.addf %62, %63 : vector<1x32xf32>
    %65 = math.tanh %64 : vector<1x32xf32>
    %66 = vector.extract_strided_slice %40 {offsets = [6, 0], sizes = [1, 32], strides = [1, 1]} : vector<8x32xf32> to vector<1x32xf32>
    %cst_29 = arith.constant dense<0.000000e+00> : vector<1x32xf32>
    %67 = tpu.matmul %65, %1, %cst_29 {dimension_numbers = #tpu.dot_dimension_numbers<[1], [0], [0], [1], [0, 0, 1, 1], [], []>} : vector<1x32xf32>, vector<32x32xf32>, vector<1x32xf32> -> vector<1x32xf32>
    %68 = arith.addf %66, %67 : vector<1x32xf32>
    %69 = math.tanh %68 : vector<1x32xf32>
    %70 = vector.extract_strided_slice %40 {offsets = [7, 0], sizes = [1, 32], strides = [1, 1]} : vector<8x32xf32> to vector<1x32xf32>
    %cst_30 = arith.constant dense<0.000000e+00> : vector<1x32xf32>
    %71 = tpu.matmul %69, %1, %cst_30 {dimension_numbers = #tpu.dot_dimension_numbers<[1], [0], [0], [1], [0, 0, 1, 1], [], []>} : vector<1x32xf32>, vector<32x32xf32>, vector<1x32xf32> -> vector<1x32xf32>
    %72 = arith.addf %70, %71 : vector<1x32xf32>
    %73 = math.tanh %72 : vector<1x32xf32>
    %74 = tpu.concatenate %45, %49, %53, %57, %61, %65, %69, %73 in 0 : vector<1x32xf32>, vector<1x32xf32>, vector<1x32xf32>, vector<1x32xf32>, vector<1x32xf32>, vector<1x32xf32>, vector<1x32xf32>, vector<1x32xf32> -> vector<8x32xf32>
    %cst_31 = arith.constant dense<0.000000e+00> : vector<8x4xf32>
    %75 = tpu.matmul %74, %3, %cst_31 {dimension_numbers = #tpu.dot_dimension_numbers<[1], [0], [0], [1], [0, 0, 1, 1], [], []>} : vector<8x32xf32>, vector<32x4xf32>, vector<8x4xf32> -> vector<8x4xf32>
    %76 = vector.broadcast %4 : vector<1x4xf32> to vector<8x4xf32>
    %77 = arith.addf %75, %76 : vector<8x4xf32>
    %c0_32 = arith.constant 0 : index
    %c0_33 = arith.constant 0 : index
    %78 = vector.load %arg3[%c0_32, %c0_33] : memref<8x4xf32, #tpu.memory_space<vmem>>, vector<8x4xf32>
    tpu.vector_store %arg3[%c0_32, %c0_33], %77 {strides = array<i32>} : memref<8x4xf32, #tpu.memory_space<vmem>>, vector<8x4xf32>,
    return
  }
}

</mosaic_0001>

<llo_original>
// kernel: forward.1
$region0: #{forward.1}
  #allocation0 [shape = 'u32[]', space=smem, size = 0x4, offset = 0x4, fixed_abs, tag = 'smem constant byte address 0x4 - core index']
  #allocation1 [shape = 'u32[72,128]{1,0:T(1,128)}', space=vmem, size = 0x9000, scoped, tag = 'internal scratch']
  %s0 = inlined_call_operand.hbm [shape: s32[8], index: 0, kind: input, shape index: {}]
  %s1 = inlined_call_operand.hbm [shape: f32[16,1,32], index: 1, kind: input, shape index: {}]
  %s2 = inlined_call_operand.hbm [shape: f32[112,32], index: 2, kind: input, shape index: {}]
  %s3 = inlined_call_operand.vmem [shape: f32[8,4], index: 3, kind: output, shape index: {}]
  %s4 = sld [smem:[#allocation0]]
  $region34: #{forward.1} parent=0
    _
  %s6 = ssub.s32 1, %s4
  %s7 = scalar_select 0, %s6, %s4
  $region1: #{forward.1} parent=0
    #allocation2 [shape = 'u8[512]{0}', space=smem, size = 0x200, scoped, tag = 'input window, operand 0, single buffered']
    #allocation3 [shape = 's32[1]{0}', space=sflag, size = 0x4, scoped, tag = 'scoped memory for forward.1']
    #allocation4 [shape = 's32[1]{0}', space=sflag, size = 0x4, scoped, tag = 'scoped memory for forward.1']
    #allocation5 [shape = 'u8[8192]{0}', space=vmem, size = 0x2000, scoped, tag = 'input window, operand 1, single buffered']
    #allocation6 [shape = 'u8[57344]{0}', space=vmem, size = 0xe000, scoped, tag = 'input window, operand 2, single buffered']
    #allocation7 [shape = 's32[1]{0}', space=sflag, size = 0x4, scoped, tag = 'scoped memory for forward.1']
    %8 = vsyncpa [#allocation4], 0
    %9 = vsyncpa [#allocation3], 0
    %10 = vsyncpa [#allocation7], 0
    // Predicated region
    $region2: #{forward.1} parent=1 // pred_check
      _
    $region3: #{forward.1} parent=1 // pred_check_branch
      %12 = sbr.rel (0) target = $region5
    $region4: #{forward.1} parent=1 // pred_region
      %14 = vsyncadd [#allocation4], 0
      %s16 = sshll.u32 %s0, 4
      %s17 = int_to_ptr.hbm [resolvable:$true] %s16
      %19 = dma.hbm_to_smem %s17, 16, [#allocation2], [#allocation4]
    $region5: #{forward.1} parent=1 // pred_fallthru
      _
    // Predicated region
    $region6: #{forward.1} parent=1 // pred_check
      _
    $region7: #{forward.1} parent=1 // pred_check_branch
      %21 = sbr.rel (0) target = $region9
    $region8: #{forward.1} parent=1 // pred_region
      %23 = vsyncadd [#allocation3], 0
      %s24 = sshll.u32 %s1, 4
      %s25 = int_to_ptr.hbm [resolvable:$true] %s24
      %s26 = sshll.u32 [#allocation5], 4
      %s27 = int_to_ptr.vmem [resolvable:$true] %s26
      %32 = dma.hbm_to_vmem [thread:$0]  %s25, 256, %s27, [#allocation3], 16, 16, 1
    $region9: #{forward.1} parent=1 // pred_fallthru
      _
    // Predicated region
    $region10: #{forward.1} parent=1 // pred_check
      _
    $region11: #{forward.1} parent=1 // pred_check_branch
      %34 = sbr.rel (0) target = $region13
    $region12: #{forward.1} parent=1 // pred_region
      %36 = vsyncadd [#allocation7], 0
      %s37 = sshll.u32 %s2, 4
      %s38 = int_to_ptr.hbm [resolvable:$true] %s37
      %s39 = sshll.u32 [#allocation6], 4
      %s40 = int_to_ptr.vmem [resolvable:$true] %s39
      %45 = dma.hbm_to_vmem [thread:$0]  %s38, 1792, %s40, [#allocation7], 128, 128, 8
    $region13: #{forward.1} parent=1 // pred_fallthru
      _
    // Predicated region
    $region14: #{forward.1} parent=1 // pred_check
      _
    $region15: #{forward.1} parent=1 // pred_check_branch
      %47 = sbr.rel (0) target = $region17
    $region16: #{forward.1} parent=1 // pred_region
      %49 = dma.done [#allocation4], 16
    $region17: #{forward.1} parent=1 // pred_fallthru
      _
    // Predicated region
    $region18: #{forward.1} parent=1 // pred_check
      _
    $region19: #{forward.1} parent=1 // pred_check_branch
      %51 = sbr.rel (0) target = $region21
    $region20: #{forward.1} parent=1 // pred_region
      %53 = dma.done [#allocation3], 256
    $region21: #{forward.1} parent=1 // pred_fallthru
      _
    // Predicated region
    $region22: #{forward.1} parent=1 // pred_check
      _
    $region23: #{forward.1} parent=1 // pred_check_branch
      %55 = sbr.rel (0) target = $region25
    $region24: #{forward.1} parent=1 // pred_region
      %57 = dma.done [#allocation7], 1792
    $region25: #{forward.1} parent=1 // pred_fallthru
      _
    %58 = sfence
    %v59 = vld [vmem:[#allocation6] sm:$0xff]
    %v60 = vld [vmem:[#allocation6 + $0x8] sm:$0xff]
    %v61 = vld [vmem:[#allocation6 + $0x10] sm:$0xff]
    %v62 = vld [vmem:[#allocation6 + $0x18] sm:$0xff]
    %v63 = vld [vmem:[#allocation6 + $0x20] sm:$0xff]
    %v64 = vld [vmem:[#allocation6 + $0x28] sm:$0xff]
    %v65 = vld [vmem:[#allocation6 + $0x30] sm:$0xff]
    %v66 = vld [vmem:[#allocation6 + $0x38] sm:$0xff]
    %v67 = vld [vmem:[#allocation6 + $0x40] sm:$0x1]
    %v68 = vld [vmem:[#allocation6 + $0x48] sm:$0xff]
    %v69 = vld [vmem:[#allocation6 + $0x50] sm:$0xff]
    %v70 = vld [vmem:[#allocation6 + $0x58] sm:$0xff]
    %v71 = vld [vmem:[#allocation6 + $0x60] sm:$0xff]
    %v72 = vld [vmem:[#allocation6 + $0x68] sm:$0x1]
    %s73 = sld [smem:[#allocation2]]
    %s74 = scalar_lea.vmem [#allocation5], %s73
    %v75 = vld [vmem:[%s74] sm:$0x1]
    %s76 = sld [smem:[#allocation2 + $0x1]]
    %s77 = scalar_lea.vmem [#allocation5], %s76
    %v78 = vld [vmem:[%s77] sm:$0x1]
    %s79 = sld [smem:[#allocation2 + $0x2]]
    %s80 = scalar_lea.vmem [#allocation5], %s79
    %v81 = vld [vmem:[%s80] sm:$0x1]
    %s82 = sld [smem:[#allocation2 + $0x3]]
    %s83 = scalar_lea.vmem [#allocation5], %s82
    %v84 = vld [vmem:[%s83] sm:$0x1]
    %s85 = sld [smem:[#allocation2 + $0x4]]
    %s86 = scalar_lea.vmem [#allocation5], %s85
    %v87 = vld [vmem:[%s86] sm:$0x1]
    %s88 = sld [smem:[#allocation2 + $0x5]]
    %s89 = scalar_lea.vmem [#allocation5], %s88
    %v90 = vld [vmem:[%s89] sm:$0x1]
    %s91 = sld [smem:[#allocation2 + $0x6]]
    %s92 = scalar_lea.vmem [#allocation5], %s91
    %v93 = vld [vmem:[%s92] sm:$0x1]
    %s94 = sld [smem:[#allocation2 + $0x7]]
    %s95 = scalar_lea.vmem [#allocation5], %s94
    %v96 = vld [vmem:[%s95] sm:$0x1]
    %v98 = vperm.slane %v78, 0
    %v101 = vperm.slane %v81, 0
    %v104 = vperm.slane %v84, 0
    %v107 = vperm.slane %v87, 0
    %v110 = vperm.slane %v90, 0
    %v113 = vperm.slane %v93, 0
    %v116 = vperm.slane %v96, 0
    %vm118 = vcmask 1040384
    %v119 = vsel %vm118, %v75, %v98
    %vm120 = vcmask 1041408
    %v121 = vsel %vm120, %v119, %v101
    %vm122 = vcmask 1042432
    %v123 = vsel %vm122, %v121, %v104
    %vm124 = vcmask 1043456
    %v125 = vsel %vm124, %v123, %v107
    %vm126 = vcmask 1044480
    %v127 = vsel %vm126, %v125, %v110
    %vm128 = vcmask 1045504
    %v129 = vsel %vm128, %v127, %v113
    %vm130 = vcmask 1046528
    %v131 = vsel %vm130, %v129, %v116
    %v132 = vperm.slane %v67, 0
    %vm133 = vcmask 261120
    %v135 = vsel %vm133, %v131, 0
    %137 = vmatpush.msra.mxu0 0.0
    %138 = vmatpush.msra.mxu0 0.0
    %139 = vmatpush.msra.mxu0 0.0
    %140 = vmatpush.msra.mxu0 0.0
    %141 = vmatpush.msra.mxu0 0.0
    %142 = vmatpush.msra.mxu0 0.0
    %143 = vmatpush.msra.mxu0 0.0
    %144 = vmatpush.msra.mxu0 0.0
    %145 = vmatpush.msra.mxu0 0.0
    %146 = vmatpush.msra.mxu0 0.0
    %147 = vmatpush.msra.mxu0 0.0
    %148 = vmatpush.msra.mxu0 0.0
    %149 = vmatpush.msra.mxu0 %v62
    %150 = vmatpush.msra.mxu0 %v61
    %151 = vmatpush.msra.mxu0 %v60
    %152 = vmatpush.msra.mxu0 %v59
    %153 = vmatmul.f32.gmra.mxu0 %v135
    %v154 = vpop.f32.mrf.mxu0
    %v155 = vadd.f32 %v132, %v154
    %156 = vdwg.mxu0
    %v158 = vsel %vm133, 0.0, 0
    %160 = vmatpush.msra.mxu0 0.0
    %161 = vmatpush.msra.mxu0 0.0
    %162 = vmatpush.msra.mxu0 0.0
    %163 = vmatpush.msra.mxu0 0.0
    %164 = vmatpush.msra.mxu0 0.0
    %165 = vmatpush.msra.mxu0 0.0
    %166 = vmatpush.msra.mxu0 0.0
    %167 = vmatpush.msra.mxu0 0.0
    %168 = vmatpush.msra.mxu0 0.0
    %169 = vmatpush.msra.mxu0 0.0
    %170 = vmatpush.msra.mxu0 0.0
    %171 = vmatpush.msra.mxu0 0.0
    %172 = vmatpush.msra.mxu0 %v66
    %173 = vmatpush.msra.mxu0 %v65
    %174 = vmatpush.msra.mxu0 %v64
    %175 = vmatpush.msra.mxu0 %v63
    %176 = vmatmul.f32.gmra.mxu0 %v158
    %v177 = vpop.f32.mrf.mxu0
    %v178 = vadd.f32 0.0, %v177
    %179 = vdwg.mxu0
    %v180 = vadd.f32 %v155, %v178
    %v181 = vtanh.pop %v180
    %v183 = vsel %vm133, %v181, 0
    %185 = vmatpush.msra.mxu0 0.0
    %186 = vmatpush.msra.mxu0 0.0
    %187 = vmatpush.msra.mxu0 0.0
    %188 = vmatpush.msra.mxu0 0.0
    %189 = vmatpush.msra.mxu0 0.0
    %190 = vmatpush.msra.mxu0 0.0
    %191 = vmatpush.msra.mxu0 0.0
    %192 = vmatpush.msra.mxu0 0.0
    %193 = vmatpush.msra.mxu0 0.0
    %194 = vmatpush.msra.mxu0 0.0
    %195 = vmatpush.msra.mxu0 0.0
    %196 = vmatpush.msra.mxu0 0.0
    %197 = vmatpush.msra.mxu0 %v66
    %198 = vmatpush.msra.mxu0 %v65
    %199 = vmatpush.msra.mxu0 %v64
    %200 = vmatpush.msra.mxu0 %v63
    %201 = vmatmul.f32.gmra.mxu0 %v183
    %v202 = vpop.f32.mrf.mxu0
    %v203 = vadd.f32 0.0, %v202
    %204 = vdwg.mxu0
    %v206 = vrot.slane %v203, 7
    %v208 = vadd.f32 %v155, %v206
    %v209 = vtanh.pop %v208
    %v211 = vrot.slane %v209, 1
    %v212 = vsel %vm133, %v211, 0
    %214 = vmatpush.msra.mxu0 0.0
    %215 = vmatpush.msra.mxu0 0.0
    %216 = vmatpush.msra.mxu0 0.0
    %217 = vmatpush.msra.mxu0 0.0
    %218 = vmatpush.msra.mxu0 0.0
    %219 = vmatpush.msra.mxu0 0.0
    %220 = vmatpush.msra.mxu0 0.0
    %221 = vmatpush.msra.mxu0 0.0
    %222 = vmatpush.msra.mxu0 0.0
    %223 = vmatpush.msra.mxu0 0.0
    %224 = vmatpush.msra.mxu0 0.0
    %225 = vmatpush.msra.mxu0 0.0
    %226 = vmatpush.msra.mxu0 %v66
    %227 = vmatpush.msra.mxu0 %v65
    %228 = vmatpush.msra.mxu0 %v64
    %229 = vmatpush.msra.mxu0 %v63
    %230 = vmatmul.f32.gmra.mxu0 %v212
    %v231 = vpop.f32.mrf.mxu0
    %v232 = vadd.f32 0.0, %v231
    %233 = vdwg.mxu0
    %v235 = vrot.slane %v232, 6
    %v237 = vadd.f32 %v155, %v235
    %v238 = vtanh.pop %v237
    %v240 = vrot.slane %v238, 2
    %v241 = vsel %vm133, %v240, 0
    %243 = vmatpush.msra.mxu0 0.0
    %244 = vmatpush.msra.mxu0 0.0
    %245 = vmatpush.msra.mxu0 0.0
    %246 = vmatpush.msra.mxu0 0.0
    %247 = vmatpush.msra.mxu0 0.0
    %248 = vmatpush.msra.mxu0 0.0
    %249 = vmatpush.msra.mxu0 0.0
    %250 = vmatpush.msra.mxu0 0.0
    %251 = vmatpush.msra.mxu0 0.0
    %252 = vmatpush.msra.mxu0 0.0
    %253 = vmatpush.msra.mxu0 0.0
    %254 = vmatpush.msra.mxu0 0.0
    %255 = vmatpush.msra.mxu0 %v66
    %256 = vmatpush.msra.mxu0 %v65
    %257 = vmatpush.msra.mxu0 %v64
    %258 = vmatpush.msra.mxu0 %v63
    %259 = vmatmul.f32.gmra.mxu0 %v241
    %v260 = vpop.f32.mrf.mxu0
    %v261 = vadd.f32 0.0, %v260
    %262 = vdwg.mxu0
    %v264 = vrot.slane %v261, 5
    %v266 = vadd.f32 %v155, %v264
    %v267 = vtanh.pop %v266
    %v269 = vrot.slane %v267, 3
    %v270 = vsel %vm133, %v269, 0
    %272 = vmatpush.msra.mxu0 0.0
    %273 = vmatpush.msra.mxu0 0.0
    %274 = vmatpush.msra.mxu0 0.0
    %275 = vmatpush.msra.mxu0 0.0
    %276 = vmatpush.msra.mxu0 0.0
    %277 = vmatpush.msra.mxu0 0.0
    %278 = vmatpush.msra.mxu0 0.0
    %279 = vmatpush.msra.mxu0 0.0
    %280 = vmatpush.msra.mxu0 0.0
    %281 = vmatpush.msra.mxu0 0.0
    %282 = vmatpush.msra.mxu0 0.0
    %283 = vmatpush.msra.mxu0 0.0
    %284 = vmatpush.msra.mxu0 %v66
    %285 = vmatpush.msra.mxu0 %v65
    %286 = vmatpush.msra.mxu0 %v64
    %287 = vmatpush.msra.mxu0 %v63
    %288 = vmatmul.f32.gmra.mxu0 %v270
    %v289 = vpop.f32.mrf.mxu0
    %v290 = vadd.f32 0.0, %v289
    %291 = vdwg.mxu0
    %v293 = vrot.slane %v290, 4
    %v295 = vadd.f32 %v155, %v293
    %v296 = vtanh.pop %v295
    %v298 = vrot.slane %v296, 4
    %v299 = vsel %vm133, %v298, 0
    %301 = vmatpush.msra.mxu0 0.0
    %302 = vmatpush.msra.mxu0 0.0
    %303 = vmatpush.msra.mxu0 0.0
    %304 = vmatpush.msra.mxu0 0.0
    %305 = vmatpush.msra.mxu0 0.0
    %306 = vmatpush.msra.mxu0 0.0
    %307 = vmatpush.msra.mxu0 0.0
    %308 = vmatpush.msra.mxu0 0.0
    %309 = vmatpush.msra.mxu0 0.0
    %310 = vmatpush.msra.mxu0 0.0
    %311 = vmatpush.msra.mxu0 0.0
    %312 = vmatpush.msra.mxu0 0.0
    %313 = vmatpush.msra.mxu0 %v66
    %314 = vmatpush.msra.mxu0 %v65
    %315 = vmatpush.msra.mxu0 %v64
    %316 = vmatpush.msra.mxu0 %v63
    %317 = vmatmul.f32.gmra.mxu0 %v299
    %v318 = vpop.f32.mrf.mxu0
    %v319 = vadd.f32 0.0, %v318
    %320 = vdwg.mxu0
    %v322 = vrot.slane %v319, 3
    %v324 = vadd.f32 %v155, %v322
    %v325 = vtanh.pop %v324
    %v327 = vrot.slane %v325, 5
    %v328 = vsel %vm133, %v327, 0
    %330 = vmatpush.msra.mxu0 0.0
    %331 = vmatpush.msra.mxu0 0.0
    %332 = vmatpush.msra.mxu0 0.0
    %333 = vmatpush.msra.mxu0 0.0
    %334 = vmatpush.msra.mxu0 0.0
    %335 = vmatpush.msra.mxu0 0.0
    %336 = vmatpush.msra.mxu0 0.0
    %337 = vmatpush.msra.mxu0 0.0
    %338 = vmatpush.msra.mxu0 0.0
    %339 = vmatpush.msra.mxu0 0.0
    %340 = vmatpush.msra.mxu0 0.0
    %341 = vmatpush.msra.mxu0 0.0
    %342 = vmatpush.msra.mxu0 %v66
    %343 = vmatpush.msra.mxu0 %v65
    %344 = vmatpush.msra.mxu0 %v64
    %345 = vmatpush.msra.mxu0 %v63
    %346 = vmatmul.f32.gmra.mxu0 %v328
    %v347 = vpop.f32.mrf.mxu0
    %v348 = vadd.f32 0.0, %v347
    %349 = vdwg.mxu0
    %v351 = vrot.slane %v348, 2
    %v353 = vadd.f32 %v155, %v351
    %v354 = vtanh.pop %v353
    %v356 = vrot.slane %v354, 6
    %v357 = vsel %vm133, %v356, 0
    %359 = vmatpush.msra.mxu0 0.0
    %360 = vmatpush.msra.mxu0 0.0
    %361 = vmatpush.msra.mxu0 0.0
    %362 = vmatpush.msra.mxu0 0.0
    %363 = vmatpush.msra.mxu0 0.0
    %364 = vmatpush.msra.mxu0 0.0
    %365 = vmatpush.msra.mxu0 0.0
    %366 = vmatpush.msra.mxu0 0.0
    %367 = vmatpush.msra.mxu0 0.0
    %368 = vmatpush.msra.mxu0 0.0
    %369 = vmatpush.msra.mxu0 0.0
    %370 = vmatpush.msra.mxu0 0.0
    %371 = vmatpush.msra.mxu0 %v66
    %372 = vmatpush.msra.mxu0 %v65
    %373 = vmatpush.msra.mxu0 %v64
    %374 = vmatpush.msra.mxu0 %v63
    %375 = vmatmul.f32.gmra.mxu0 %v357
    %v376 = vpop.f32.mrf.mxu0
    %v377 = vadd.f32 0.0, %v376
    %378 = vdwg.mxu0
    %v380 = vrot.slane %v377, 1
    %v382 = vadd.f32 %v155, %v380
    %v383 = vtanh.pop %v382
    %v384 = vsel %vm118, %v181, %v209
    %v385 = vsel %vm120, %v384, %v238
    %v386 = vsel %vm122, %v385, %v267
    %v387 = vsel %vm124, %v386, %v296
    %v388 = vsel %vm126, %v387, %v325
    %v389 = vsel %vm128, %v388, %v354
    %v390 = vsel %vm130, %v389, %v383
    %v391 = vperm.slane %v72, 0
    %v393 = vsel %vm133, %v390, 0
    %395 = vmatpush.msra.mxu0 0.0
    %396 = vmatpush.msra.mxu0 0.0
    %397 = vmatpush.msra.mxu0 0.0
    %398 = vmatpush.msra.mxu0 0.0
    %399 = vmatpush.msra.mxu0 0.0
    %400 = vmatpush.msra.mxu0 0.0
    %401 = vmatpush.msra.mxu0 0.0
    %402 = vmatpush.msra.mxu0 0.0
    %403 = vmatpush.msra.mxu0 0.0
    %404 = vmatpush.msra.mxu0 0.0
    %405 = vmatpush.msra.mxu0 0.0
    %406 = vmatpush.msra.mxu0 0.0
    %407 = vmatpush.msra.mxu0 %v71
    %408 = vmatpush.msra.mxu0 %v70
    %409 = vmatpush.msra.mxu0 %v69
    %410 = vmatpush.msra.mxu0 %v68
    %411 = vmatmul.f32.gmra.mxu0 %v393
    %v412 = vpop.f32.mrf.mxu0
    %v413 = vadd.f32 %v391, %v412
    %414 = vdwg.mxu0
    %vm415 = vcmask 31744
    %416 = vst.msk [vmem:[%s3] sm:$0xff] %vm415, %v413
    // Predicated region
    $region26: #{forward.1} parent=1 // pred_check
      _
    $region27: #{forward.1} parent=1 // pred_check_branch
      %418 = sbr.rel (0) target = $region29
    $region28: #{forward.1} parent=1 // pred_region
      _
    $region29: #{forward.1} parent=1 // pred_fallthru
      _
    // Predicated region
    $region30: #{forward.1} parent=1 // pred_check
      _
    $region31: #{forward.1} parent=1 // pred_check_branch
      %420 = sbr.rel (0) target = $region33
    $region32: #{forward.1} parent=1 // pred_region
      _
    $region33: #{forward.1} parent=1 // pred_fallthru
      _
    %421 = vsyncpa [#allocation3], 1
    %422 = vsyncpa [#allocation7], 1
    %423 = vsyncpa [#allocation4], 1

</llo_original>
